<compile_context>
chip_gen: v6e
topology: v6e:2x2x1
jax: 0.10.0
libtpu: 0.0.40
codegen_flags: <defaults>
</compile_context>

<pallas_src>
import functools

import numpy as np
import jax
import jax.numpy as jnp
from jax.experimental import pallas as pl
from jax.experimental.pallas import tpu as pltpu


# -----------------------------------------------------------------------------
# Fused whole-layer kernel (transposed, lane-dense (C, M) layout)
# -----------------------------------------------------------------------------
def _resnet_layer_kernel(p0_ref, wc_ref, w1_ref, mask_ref, aux_ref, out_ref,
                         *, h_out, w_out, c_out, eps):
    m = out_ref.shape[1]

    def bn(y, gamma, beta):
        # Training-mode BatchNorm over the M axis (= N*H*W), biased variance,
        # affine folded into a single scale/shift; rsqrt stays on the EUP.
        mean = jnp.mean(y, axis=1, keepdims=True)
        var = jnp.mean(jnp.square(y - mean), axis=1, keepdims=True)
        scale = gamma * jax.lax.rsqrt(var + eps)
        return y * scale + (beta - mean * scale)

    g0, bt0 = aux_ref[0], aux_ref[1]            # (C, 1) each
    g1, bt1 = aux_ref[2], aux_ref[3]
    b_proj = aux_ref[4]

    # block[0] conv and the 1x1 stride-2 projection fused into ONE matmul:
    # rows [0, C) of wc = 3x3 conv weight, rows [C, 2C) = proj weight on the centre tap.
    y = jnp.dot(wc_ref[...], p0_ref[...], preferred_element_type=jnp.float32)  # (2C, M)
    y0 = y[:c_out, :]
    y_proj = y[c_out:, :] + b_proj

    h0 = jnp.maximum(bn(y0, g0, bt0), 0.0)      # (C, M) -- one f32 vreg

    # block[1]: 3x3 stride-1 pad-1 conv.  Tap (di, dj) of destination column m reads source
    # column m + di*w_out + dj of the same image; cross-image / out-of-bounds columns are
    # zeroed by the precomputed boundary mask.  Shift = XLU lane rotation; the 9 shifted
    # copies are stacked sublane-wise and contracted in a single MXU matmul.
    taps = []
    tap = 0
    for di in (-1, 0, 1):
        for dj in (-1, 0, 1):
            s = di * w_out + dj
            shifted = h0 if s == 0 else pltpu.roll(h0, shift=(-s) % m, axis=1)
            if s != 0:
                shifted = shifted * mask_ref[tap]       # (1, M) 0/1 boundary mask
            taps.append(shifted)
            tap += 1
    stacked = jnp.concatenate(taps, axis=0)             # (9*C, M)
    y1 = jnp.dot(w1_ref[...], stacked, preferred_element_type=jnp.float32)   # (C, M)

    y1 = bn(y1, g1, bt1) + y_proj
    out_ref[...] = jnp.maximum(y1, 0.0).astype(out_ref.dtype)


# -----------------------------------------------------------------------------
# Wrapper: compact prep + single pallas_call
# -----------------------------------------------------------------------------
def resnet_layer_forward(x_nchw, p, *, eps=1e-5):
    x = x_nchw.astype(jnp.float32)
    n, c_in_first, h, w = x.shape
    c_out, _, kh, kw = p["w0"].shape
    c_mid = p["w1"].shape[1]

    # ---- im2col for block[0] (3x3, stride 2, pad 1): one XLA op.  Output channel ordering
    # of conv_general_dilated_patches is input-channel major / tap minor (ci*9 + tap).
    patches = jax.lax.conv_general_dilated_patches(
        x, (kh, kw), (2, 2), [(1, 1), (1, 1)],
        dimension_numbers=("NCHW", "OIHW", "NCHW"))      # (N, C_in*9, H_out, W_out)
    _, k0, h_out, w_out = patches.shape
    m = n * h_out * w_out
    k0_pad = -(-k0 // 8) * 8                             # pad K to a multiple of 8
    p0_t = jnp.transpose(patches, (1, 0, 2, 3)).reshape(k0, m)
    p0_t = jnp.pad(p0_t, ((0, k0_pad - k0), (0, 0)))     # (k0_pad, M) lane-dense

    # ---- combined block[0] + projection weight (projection input == centre tap of patches).
    w0_flat = p["w0"].reshape(c_out, k0)                 # column = ci*9 + tap
    wc = jnp.zeros((2 * c_out, k0_pad), jnp.float32)
    wc = wc.at[:c_out, :k0].set(w0_flat)
    centre = (kh // 2) * kw + (kw // 2)                  # tap index 4
    wc = wc.at[c_out:, centre:k0:kh * kw].set(p["proj_w"].reshape(c_out, c_in_first))

    # ---- block[1] weight, flattened tap-major / channel-minor to match the in-kernel stack.
    w1_flat = jnp.transpose(p["w1"], (0, 2, 3, 1)).reshape(c_out, kh * kw * c_mid)

    # ---- static 0/1 boundary masks for the 9 taps (host-side numpy; no in-kernel int math).
    ho = np.arange(h_out)
    wo = np.arange(w_out)
    masks = np.empty((kh * kw, 1, m), np.float32)
    t = 0
    for di in (-1, 0, 1):
        for dj in (-1, 0, 1):
            vh = (ho + di >= 0) & (ho + di < h_out)
            vw = (wo + dj >= 0) & (wo + dj < w_out)
            masks[t, 0] = np.tile((vh[:, None] & vw[None, :]).reshape(-1), n)
            t += 1
    masks = jnp.asarray(masks)

    # ---- per-channel params: gamma0, beta0, gamma1, beta1, proj bias.
    # NOTE: conv biases b0/b1 are intentionally unused: a per-channel constant cancels
    # exactly in training-mode BatchNorm (would NOT hold for eval-mode running stats).
    aux = jnp.stack([p["g0"], p["bt0"], p["g1"], p["bt1"], p["proj_b"]])[:, :, None]  # (5,C,1)

    inputs = [p0_t, wc, w1_flat, masks, aux]
    kernel = functools.partial(_resnet_layer_kernel, h_out=h_out, w_out=w_out,
                               c_out=c_out, eps=eps)

    flops = (2 * m * (2 * c_out) * k0_pad          # fused block[0] + projection matmul
             + 2 * m * c_out * (kh * kw * c_mid)   # block[1] matmul
             + 20 * m * c_out)                     # BN / ReLU / masks elementwise
    bytes_accessed = sum(int(a.size) * a.dtype.itemsize for a in inputs) + m * c_out * 4

    out_t = pl.pallas_call(
        kernel,
        out_shape=jax.ShapeDtypeStruct((c_out, m), jnp.float32),
        grid=(1,),
        in_specs=[pl.BlockSpec(a.shape, lambda i, nd=a.ndim: (0,) * nd) for a in inputs],
        out_specs=pl.BlockSpec((c_out, m), lambda i: (0, 0)),
        cost_estimate=pl.CostEstimate(flops=flops, transcendentals=2 * c_out,
                                      bytes_accessed=bytes_accessed),
    )(*inputs)

    # (C, M) -> NCHW  (M = n*h_out*w_out, row-major).
    # TODO(synk): when chaining fused layers, keep the lane-dense (C, M) activation and skip
    # this transpose plus the next layer's im2col round trip.
    return jnp.transpose(out_t.reshape(c_out, n, h_out, w_out), (1, 0, 2, 3))


# -----------------------------------------------------------------------------
# Pure-JAX reference (lax.conv, HIGHEST precision) for correctness check
# -----------------------------------------------------------------------------
def _ref_forward(x, p, eps=1e-5):
    def conv(x, w, b, stride, pad):
        y = jax.lax.conv_general_dilated(
            x, w, (stride, stride), [(pad, pad), (pad, pad)],
            dimension_numbers=("NCHW", "OIHW", "NCHW"),
            precision=jax.lax.Precision.HIGHEST)
        return y + b[None, :, None, None]

    def bn(y, g, bt):
        mu = jnp.mean(y, axis=(0, 2, 3), keepdims=True)
        var = jnp.mean(jnp.square(y - mu), axis=(0, 2, 3), keepdims=True)
        return ((y - mu) * jax.lax.rsqrt(var + eps) * g[None, :, None, None]
                + bt[None, :, None, None])

    proj = conv(x, p["proj_w"], p["proj_b"], 2, 0)
    h = jax.nn.relu(bn(conv(x, p["w0"], p["b0"], 2, 1), p["g0"], p["bt0"]))
    h = jax.nn.relu(bn(conv(h, p["w1"], p["b1"], 1, 1), p["g1"], p["bt1"]) + proj)
    return h


if __name__ == "__main__":
    # Layer config: in_channels=8, out_channels=8, num_conv=2, residual_step=2, first=False
    C_IN, C_OUT = 8, 8
    C_IN_FIRST = C_IN // 2          # 4 (since first=False)
    N, H, W = 2, 16, 16

    key = jax.random.PRNGKey(0)
    ks = jax.random.split(key, 11)

    params = {
        # block[0]: Conv2d(4, 8, 3, stride=2, pad=1) + BatchNorm2d(8)
        "w0": 0.2 * jax.random.normal(ks[0], (C_OUT, C_IN_FIRST, 3, 3), jnp.float32),
        "b0": 0.1 * jax.random.normal(ks[1], (C_OUT,), jnp.float32),
        "g0": 1.0 + 0.1 * jax.random.normal(ks[2], (C_OUT,), jnp.float32),
        "bt0": 0.1 * jax.random.normal(ks[3], (C_OUT,), jnp.float32),
        # block[1]: Conv2d(8, 8, 3, stride=1, pad=1) + BatchNorm2d(8)
        "w1": 0.2 * jax.random.normal(ks[4], (C_OUT, C_IN, 3, 3), jnp.float32),
        "b1": 0.1 * jax.random.normal(ks[5], (C_OUT,), jnp.float32),
        "g1": 1.0 + 0.1 * jax.random.normal(ks[6], (C_OUT,), jnp.float32),
        "bt1": 0.1 * jax.random.normal(ks[7], (C_OUT,), jnp.float32),
        # projections[0]: Conv2d(4, 8, 1, stride=2)
        "proj_w": 0.2 * jax.random.normal(ks[8], (C_OUT, C_IN_FIRST, 1, 1), jnp.float32),
        "proj_b": 0.1 * jax.random.normal(ks[9], (C_OUT,), jnp.float32),
    }

    x = jax.random.normal(ks[10], (N, C_IN_FIRST, H, W), jnp.float32)  # NCHW, like PyTorch

    out = jax.jit(resnet_layer_forward)(x, params)
    out = jax.block_until_ready(out)
    assert out.shape == (N, C_OUT, H // 2, W // 2), out.shape

    ref = jax.block_until_ready(_ref_forward(x, params))
    err = float(jnp.max(jnp.abs(out - ref)))
    assert jnp.allclose(out, ref, atol=5e-3, rtol=5e-3), "max abs err %e" % err

    print("KERNEL_OK")
</pallas_src>

<mosaic_0001>
module attributes {stable_mosaic.version = 11 : i64} {
  func.func @_resnet_layer_kernel(%arg0: i32, %arg1: memref<40x128xf32, #tpu.memory_space<vmem>>, %arg2: memref<16x40xf32, #tpu.memory_space<vmem>>, %arg3: memref<8x72xf32, #tpu.memory_space<vmem>>, %arg4: memref<9x1x128xf32, #tpu.memory_space<vmem>>, %arg5: memref<5x8x1xf32, #tpu.memory_space<vmem>>, %arg6: memref<8x128xf32, #tpu.memory_space<vmem>>) attributes {dimension_semantics = [#tpu.dimension_semantics<arbitrary>], iteration_bounds = array<i64: 1>, scalar_prefetch = 0 : i64, scratch_operands = 0 : i64, tpu.core_type = #tpu.core_type<tc>, window_params = [{pipeline_mode = #tpu.pipeline_mode<synchronous>, transform_indices = @transform_0, window_bounds = array<i64: 40, 128>}, {pipeline_mode = #tpu.pipeline_mode<synchronous>, transform_indices = @transform_1, window_bounds = array<i64: 16, 40>}, {pipeline_mode = #tpu.pipeline_mode<synchronous>, transform_indices = @transform_2, window_bounds = array<i64: 8, 72>}, {pipeline_mode = #tpu.pipeline_mode<synchronous>, transform_indices = @transform_3, window_bounds = array<i64: 9, 1, 128>}, {pipeline_mode = #tpu.pipeline_mode<synchronous>, transform_indices = @transform_4, window_bounds = array<i64: 5, 8, 1>}, {pipeline_mode = #tpu.pipeline_mode<synchronous>, transform_indices = @transform_5, window_bounds = array<i64: 8, 128>}]} {
    %c0 = arith.constant 0 : index
    %c0_0 = arith.constant 0 : index
    %c0_1 = arith.constant 0 : index
    %0 = vector.load %arg5[%c0, %c0_0, %c0_1] : memref<5x8x1xf32, #tpu.memory_space<vmem>>, vector<1x8x1xf32>
    %1 = vector.shape_cast %0 : vector<1x8x1xf32> to vector<8x1xf32>
    %c1 = arith.constant 1 : index
    %c0_2 = arith.constant 0 : index
    %c0_3 = arith.constant 0 : index
    %2 = vector.load %arg5[%c1, %c0_2, %c0_3] : memref<5x8x1xf32, #tpu.memory_space<vmem>>, vector<1x8x1xf32>
    %3 = vector.shape_cast %2 : vector<1x8x1xf32> to vector<8x1xf32>
    %c2 = arith.constant 2 : index
    %c0_4 = arith.constant 0 : index
    %c0_5 = arith.constant 0 : index
    %4 = vector.load %arg5[%c2, %c0_4, %c0_5] : memref<5x8x1xf32, #tpu.memory_space<vmem>>, vector<1x8x1xf32>
    %5 = vector.shape_cast %4 : vector<1x8x1xf32> to vector<8x1xf32>
    %c3 = arith.constant 3 : index
    %c0_6 = arith.constant 0 : index
    %c0_7 = arith.constant 0 : index
    %6 = vector.load %arg5[%c3, %c0_6, %c0_7] : memref<5x8x1xf32, #tpu.memory_space<vmem>>, vector<1x8x1xf32>
    %7 = vector.shape_cast %6 : vector<1x8x1xf32> to vector<8x1xf32>
    %c4 = arith.constant 4 : index
    %c0_8 = arith.constant 0 : index
    %c0_9 = arith.constant 0 : index
    %8 = vector.load %arg5[%c4, %c0_8, %c0_9] : memref<5x8x1xf32, #tpu.memory_space<vmem>>, vector<1x8x1xf32>
    %9 = vector.shape_cast %8 : vector<1x8x1xf32> to vector<8x1xf32>
    %c0_10 = arith.constant 0 : index
    %c0_11 = arith.constant 0 : index
    %10 = vector.load %arg2[%c0_10, %c0_11] : memref<16x40xf32, #tpu.memory_space<vmem>>, vector<16x40xf32>
    %c0_12 = arith.constant 0 : index
    %c0_13 = arith.constant 0 : index
    %11 = vector.load %arg1[%c0_12, %c0_13] : memref<40x128xf32, #tpu.memory_space<vmem>>, vector<40x128xf32>
    %cst = arith.constant dense<0.000000e+00> : vector<16x128xf32>
    %12 = tpu.matmul %10, %11, %cst {dimension_numbers = #tpu.dot_dimension_numbers<[1], [0], [0], [1], [0, 0, 1, 1], [], []>} : vector<16x40xf32>, vector<40x128xf32>, vector<16x128xf32> -> vector<16x128xf32>
    %13 = vector.extract_strided_slice %12 {offsets = [0, 0], sizes = [8, 128], strides = [1, 1]} : vector<16x128xf32> to vector<8x128xf32>
    %14 = vector.extract_strided_slice %12 {offsets = [8, 0], sizes = [8, 128], strides = [1, 1]} : vector<16x128xf32> to vector<8x128xf32>
    %15 = vector.broadcast %9 : vector<8x1xf32> to vector<8x128xf32>
    %16 = arith.addf %14, %15 : vector<8x128xf32>
    %cst_14 = arith.constant dense<0.000000e+00> : vector<8xf32>
    %17 = vector.multi_reduction <add>, %13, %cst_14 [1] : vector<8x128xf32> to vector<8xf32>
    %18 = vector.shape_cast %17 : vector<8xf32> to vector<8x1xf32>
    %cst_15 = arith.constant 1.280000e+02 : f32
    %19 = vector.broadcast %cst_15 : f32 to vector<8x1xf32>
    %20 = arith.divf %18, %19 : vector<8x1xf32>
    %21 = vector.broadcast %20 : vector<8x1xf32> to vector<8x128xf32>
    %22 = arith.subf %13, %21 : vector<8x128xf32>
    %23 = arith.mulf %22, %22 : vector<8x128xf32>
    %cst_16 = arith.constant dense<0.000000e+00> : vector<8xf32>
    %24 = vector.multi_reduction <add>, %23, %cst_16 [1] : vector<8x128xf32> to vector<8xf32>
    %25 = vector.shape_cast %24 : vector<8xf32> to vector<8x1xf32>
    %cst_17 = arith.constant 1.280000e+02 : f32
    %26 = vector.broadcast %cst_17 : f32 to vector<8x1xf32>
    %27 = arith.divf %25, %26 : vector<8x1xf32>
    %cst_18 = arith.constant 9.99999974E-6 : f32
    %28 = vector.broadcast %cst_18 : f32 to vector<8x1xf32>
    %29 = arith.addf %27, %28 : vector<8x1xf32>
    %30 = math.rsqrt %29 : vector<8x1xf32>
    %31 = arith.mulf %1, %30 : vector<8x1xf32>
    %32 = vector.broadcast %31 : vector<8x1xf32> to vector<8x128xf32>
    %33 = arith.mulf %13, %32 : vector<8x128xf32>
    %34 = arith.mulf %20, %31 : vector<8x1xf32>
    %35 = arith.subf %3, %34 : vector<8x1xf32>
    %36 = vector.broadcast %35 : vector<8x1xf32> to vector<8x128xf32>
    %37 = arith.addf %33, %36 : vector<8x128xf32>
    %cst_19 = arith.constant 0.000000e+00 : f32
    %38 = vector.broadcast %cst_19 : f32 to vector<8x128xf32>
    %39 = arith.maximumf %37, %38 : vector<8x128xf32>
    %c9_i32 = arith.constant 9 : i32
    %40 = tpu.dynamic_rotate %39 by %c9_i32 dim 1 : vector<8x128xf32>, i32 -> vector<8x128xf32>
    %c0_20 = arith.constant 0 : index
    %c0_21 = arith.constant 0 : index
    %c0_22 = arith.constant 0 : index
    %41 = vector.load %arg4[%c0_20, %c0_21, %c0_22] : memref<9x1x128xf32, #tpu.memory_space<vmem>>, vector<1x1x128xf32>
    %42 = vector.shape_cast %41 : vector<1x1x128xf32> to vector<1x128xf32>
    %43 = vector.broadcast %42 : vector<1x128xf32> to vector<8x128xf32>
    %44 = arith.mulf %40, %43 : vector<8x128xf32>
    %c8_i32 = arith.constant 8 : i32
    %45 = tpu.dynamic_rotate %39 by %c8_i32 dim 1 : vector<8x128xf32>, i32 -> vector<8x128xf32>
    %c1_23 = arith.constant 1 : index
    %c0_24 = arith.constant 0 : index
    %c0_25 = arith.constant 0 : index
    %46 = vector.load %arg4[%c1_23, %c0_24, %c0_25] : memref<9x1x128xf32, #tpu.memory_space<vmem>>, vector<1x1x128xf32>
    %47 = vector.shape_cast %46 : vector<1x1x128xf32> to vector<1x128xf32>
    %48 = vector.broadcast %47 : vector<1x128xf32> to vector<8x128xf32>
    %49 = arith.mulf %45, %48 : vector<8x128xf32>
    %c7_i32 = arith.constant 7 : i32
    %50 = tpu.dynamic_rotate %39 by %c7_i32 dim 1 : vector<8x128xf32>, i32 -> vector<8x128xf32>
    %c2_26 = arith.constant 2 : index
    %c0_27 = arith.constant 0 : index
    %c0_28 = arith.constant 0 : index
    %51 = vector.load %arg4[%c2_26, %c0_27, %c0_28] : memref<9x1x128xf32, #tpu.memory_space<vmem>>, vector<1x1x128xf32>
    %52 = vector.shape_cast %51 : vector<1x1x128xf32> to vector<1x128xf32>
    %53 = vector.broadcast %52 : vector<1x128xf32> to vector<8x128xf32>
    %54 = arith.mulf %50, %53 : vector<8x128xf32>
    %c1_i32 = arith.constant 1 : i32
    %55 = tpu.dynamic_rotate %39 by %c1_i32 dim 1 : vector<8x128xf32>, i32 -> vector<8x128xf32>
    %c3_29 = arith.constant 3 : index
    %c0_30 = arith.constant 0 : index
    %c0_31 = arith.constant 0 : index
    %56 = vector.load %arg4[%c3_29, %c0_30, %c0_31] : memref<9x1x128xf32, #tpu.memory_space<vmem>>, vector<1x1x128xf32>
    %57 = vector.shape_cast %56 : vector<1x1x128xf32> to vector<1x128xf32>
    %58 = vector.broadcast %57 : vector<1x128xf32> to vector<8x128xf32>
    %59 = arith.mulf %55, %58 : vector<8x128xf32>
    %c127_i32 = arith.constant 127 : i32
    %60 = tpu.dynamic_rotate %39 by %c127_i32 dim 1 : vector<8x128xf32>, i32 -> vector<8x128xf32>
    %c5 = arith.constant 5 : index
    %c0_32 = arith.constant 0 : index
    %c0_33 = arith.constant 0 : index
    %61 = vector.load %arg4[%c5, %c0_32, %c0_33] : memref<9x1x128xf32, #tpu.memory_space<vmem>>, vector<1x1x128xf32>
    %62 = vector.shape_cast %61 : vector<1x1x128xf32> to vector<1x128xf32>
    %63 = vector.broadcast %62 : vector<1x128xf32> to vector<8x128xf32>
    %64 = arith.mulf %60, %63 : vector<8x128xf32>
    %c121_i32 = arith.constant 121 : i32
    %65 = tpu.dynamic_rotate %39 by %c121_i32 dim 1 : vector<8x128xf32>, i32 -> vector<8x128xf32>
    %c6 = arith.constant 6 : index
    %c0_34 = arith.constant 0 : index
    %c0_35 = arith.constant 0 : index
    %66 = vector.load %arg4[%c6, %c0_34, %c0_35] : memref<9x1x128xf32, #tpu.memory_space<vmem>>, vector<1x1x128xf32>
    %67 = vector.shape_cast %66 : vector<1x1x128xf32> to vector<1x128xf32>
    %68 = vector.broadcast %67 : vector<1x128xf32> to vector<8x128xf32>
    %69 = arith.mulf %65, %68 : vector<8x128xf32>
    %c120_i32 = arith.constant 120 : i32
    %70 = tpu.dynamic_rotate %39 by %c120_i32 dim 1 : vector<8x128xf32>, i32 -> vector<8x128xf32>
    %c7 = arith.constant 7 : index
    %c0_36 = arith.constant 0 : index
    %c0_37 = arith.constant 0 : index
    %71 = vector.load %arg4[%c7, %c0_36, %c0_37] : memref<9x1x128xf32, #tpu.memory_space<vmem>>, vector<1x1x128xf32>
    %72 = vector.shape_cast %71 : vector<1x1x128xf32> to vector<1x128xf32>
    %73 = vector.broadcast %72 : vector<1x128xf32> to vector<8x128xf32>
    %74 = arith.mulf %70, %73 : vector<8x128xf32>
    %c119_i32 = arith.constant 119 : i32
    %75 = tpu.dynamic_rotate %39 by %c119_i32 dim 1 : vector<8x128xf32>, i32 -> vector<8x128xf32>
    %c8 = arith.constant 8 : index
    %c0_38 = arith.constant 0 : index
    %c0_39 = arith.constant 0 : index
    %76 = vector.load %arg4[%c8, %c0_38, %c0_39] : memref<9x1x128xf32, #tpu.memory_space<vmem>>, vector<1x1x128xf32>
    %77 = vector.shape_cast %76 : vector<1x1x128xf32> to vector<1x128xf32>
    %78 = vector.broadcast %77 : vector<1x128xf32> to vector<8x128xf32>
    %79 = arith.mulf %75, %78 : vector<8x128xf32>
    %80 = tpu.concatenate %44, %49, %54, %59, %39, %64, %69, %74, %79 in 0 : vector<8x128xf32>, vector<8x128xf32>, vector<8x128xf32>, vector<8x128xf32>, vector<8x128xf32>, vector<8x128xf32>, vector<8x128xf32>, vector<8x128xf32>, vector<8x128xf32> -> vector<72x128xf32>
    %c0_40 = arith.constant 0 : index
    %c0_41 = arith.constant 0 : index
    %81 = vector.load %arg3[%c0_40, %c0_41] : memref<8x72xf32, #tpu.memory_space<vmem>>, vector<8x72xf32>
    %cst_42 = arith.constant dense<0.000000e+00> : vector<8x128xf32>
    %82 = tpu.matmul %81, %80, %cst_42 {dimension_numbers = #tpu.dot_dimension_numbers<[1], [0], [0], [1], [0, 0, 1, 1], [], []>} : vector<8x72xf32>, vector<72x128xf32>, vector<8x128xf32> -> vector<8x128xf32>
    %cst_43 = arith.constant dense<0.000000e+00> : vector<8xf32>
    %83 = vector.multi_reduction <add>, %82, %cst_43 [1] : vector<8x128xf32> to vector<8xf32>
    %84 = vector.shape_cast %83 : vector<8xf32> to vector<8x1xf32>
    %cst_44 = arith.constant 1.280000e+02 : f32
    %85 = vector.broadcast %cst_44 : f32 to vector<8x1xf32>
    %86 = arith.divf %84, %85 : vector<8x1xf32>
    %87 = vector.broadcast %86 : vector<8x1xf32> to vector<8x128xf32>
    %88 = arith.subf %82, %87 : vector<8x128xf32>
    %89 = arith.mulf %88, %88 : vector<8x128xf32>
    %cst_45 = arith.constant dense<0.000000e+00> : vector<8xf32>
    %90 = vector.multi_reduction <add>, %89, %cst_45 [1] : vector<8x128xf32> to vector<8xf32>
    %91 = vector.shape_cast %90 : vector<8xf32> to vector<8x1xf32>
    %cst_46 = arith.constant 1.280000e+02 : f32
    %92 = vector.broadcast %cst_46 : f32 to vector<8x1xf32>
    %93 = arith.divf %91, %92 : vector<8x1xf32>
    %cst_47 = arith.constant 9.99999974E-6 : f32
    %94 = vector.broadcast %cst_47 : f32 to vector<8x1xf32>
    %95 = arith.addf %93, %94 : vector<8x1xf32>
    %96 = math.rsqrt %95 : vector<8x1xf32>
    %97 = arith.mulf %5, %96 : vector<8x1xf32>
    %98 = vector.broadcast %97 : vector<8x1xf32> to vector<8x128xf32>
    %99 = arith.mulf %82, %98 : vector<8x128xf32>
    %100 = arith.mulf %86, %97 : vector<8x1xf32>
    %101 = arith.subf %7, %100 : vector<8x1xf32>
    %102 = vector.broadcast %101 : vector<8x1xf32> to vector<8x128xf32>
    %103 = arith.addf %99, %102 : vector<8x128xf32>
    %104 = arith.addf %103, %16 : vector<8x128xf32>
    %cst_48 = arith.constant 0.000000e+00 : f32
    %105 = vector.broadcast %cst_48 : f32 to vector<8x128xf32>
    %106 = arith.maximumf %104, %105 : vector<8x128xf32>
    %c0_49 = arith.constant 0 : index
    %c0_50 = arith.constant 0 : index
    %107 = vector.load %arg6[%c0_49, %c0_50] : memref<8x128xf32, #tpu.memory_space<vmem>>, vector<8x128xf32>
    tpu.vector_store %arg6[%c0_49, %c0_50], %106 {strides = array<i32>} : memref<8x128xf32, #tpu.memory_space<vmem>>, vector<8x128xf32>,
    return
  }
  func.func @transform_0(%arg0: i32) -> (i32, i32) {
    %c0_i32 = arith.constant 0 : i32
    %c0_i32_0 = arith.constant 0 : i32
    %c0_i32_1 = arith.constant 0 : i32
    return %c0_i32, %c0_i32_0 : i32, i32
  }
  func.func @transform_1(%arg0: i32) -> (i32, i32) {
    %c0_i32 = arith.constant 0 : i32
    %c0_i32_0 = arith.constant 0 : i32
    %c0_i32_1 = arith.constant 0 : i32
    return %c0_i32, %c0_i32_0 : i32, i32
  }
  func.func @transform_2(%arg0: i32) -> (i32, i32) {
    %c0_i32 = arith.constant 0 : i32
    %c0_i32_0 = arith.constant 0 : i32
    %c0_i32_1 = arith.constant 0 : i32
    return %c0_i32, %c0_i32_0 : i32, i32
  }
  func.func @transform_3(%arg0: i32) -> (i32, i32, i32) {
    %c0_i32 = arith.constant 0 : i32
    %c0_i32_0 = arith.constant 0 : i32
    %c0_i32_1 = arith.constant 0 : i32
    %c0_i32_2 = arith.constant 0 : i32
    return %c0_i32, %c0_i32_0, %c0_i32_1 : i32, i32, i32
  }
  func.func @transform_4(%arg0: i32) -> (i32, i32, i32) {
    %c0_i32 = arith.constant 0 : i32
    %c0_i32_0 = arith.constant 0 : i32
    %c0_i32_1 = arith.constant 0 : i32
    %c0_i32_2 = arith.constant 0 : i32
    return %c0_i32, %c0_i32_0, %c0_i32_1 : i32, i32, i32
  }
  func.func @transform_5(%arg0: i32) -> (i32, i32) {
    %c0_i32 = arith.constant 0 : i32
    %c0_i32_0 = arith.constant 0 : i32
    %c0_i32_1 = arith.constant 0 : i32
    return %c0_i32, %c0_i32_0 : i32, i32
  }
}

</mosaic_0001>

<llo_original>
// kernel: resnet_layer_forward.1
$region0: #{resnet_layer_forward.1}
  #allocation0 [shape = 'u32[]', space=smem, size = 0x4, offset = 0x4, fixed_abs, tag = 'smem constant byte address 0x4 - core index']
  #allocation1 [shape = 'u32[144,128]{1,0:T(1,128)}', space=vmem, size = 0x12000, scoped, tag = 'internal scratch']
  %s0 = inlined_call_operand.vmem [shape: f32[40,128], index: 0, kind: input, shape index: {}]
  %s1 = inlined_call_operand.vmem [shape: f32[16,40], index: 1, kind: input, shape index: {}]
  %s2 = inlined_call_operand.vmem [shape: f32[8,72], index: 2, kind: input, shape index: {}]
  %s3 = inlined_call_operand.vmem [shape: f32[9,1,128], index: 3, kind: input, shape index: {}]
  %s4 = inlined_call_operand.vmem [shape: f32[5,8,1], index: 4, kind: input, shape index: {}]
  %s5 = inlined_call_operand.vmem [shape: f32[8,128], index: 5, kind: output, shape index: {}]
  %s6 = sld [smem:[#allocation0]]
  $region30: #{resnet_layer_forward.1} parent=0
    _
  %s8 = ssub.s32 1, %s6
  %s9 = scalar_select 0, %s8, %s6
  // Predicated region
  $region2: #{resnet_layer_forward.1} parent=0 // pred_check
    _
  $region3: #{resnet_layer_forward.1} parent=0 // pred_check_branch
    %11 = sbr.rel (0) target = $region5
  $region4: #{resnet_layer_forward.1} parent=0 // pred_region
    _
  $region5: #{resnet_layer_forward.1} parent=0 // pred_fallthru
    _
  // Predicated region
  $region6: #{resnet_layer_forward.1} parent=0 // pred_check
    _
  $region7: #{resnet_layer_forward.1} parent=0 // pred_check_branch
    %13 = sbr.rel (0) target = $region9
  $region8: #{resnet_layer_forward.1} parent=0 // pred_region
    _
  $region9: #{resnet_layer_forward.1} parent=0 // pred_fallthru
    _
  // Predicated region
  $region10: #{resnet_layer_forward.1} parent=0 // pred_check
    _
  $region11: #{resnet_layer_forward.1} parent=0 // pred_check_branch
    %15 = sbr.rel (0) target = $region13
  $region12: #{resnet_layer_forward.1} parent=0 // pred_region
    _
  $region13: #{resnet_layer_forward.1} parent=0 // pred_fallthru
    _
  // Predicated region
  $region14: #{resnet_layer_forward.1} parent=0 // pred_check
    _
  $region15: #{resnet_layer_forward.1} parent=0 // pred_check_branch
    %17 = sbr.rel (0) target = $region17
  $region16: #{resnet_layer_forward.1} parent=0 // pred_region
    _
  $region17: #{resnet_layer_forward.1} parent=0 // pred_fallthru
    _
  // Predicated region
  $region18: #{resnet_layer_forward.1} parent=0 // pred_check
    _
  $region19: #{resnet_layer_forward.1} parent=0 // pred_check_branch
    %19 = sbr.rel (0) target = $region21
  $region20: #{resnet_layer_forward.1} parent=0 // pred_region
    _
  $region21: #{resnet_layer_forward.1} parent=0 // pred_fallthru
    _
  %v20 = vld [vmem:[%s4] sm:$0xff]
  %s21 = scalar_lea.vmem %s4, 8
  %v22 = vld [vmem:[%s21] sm:$0xff]
  %s23 = scalar_lea.vmem %s4, 16
  %v24 = vld [vmem:[%s23] sm:$0xff]
  %s25 = scalar_lea.vmem %s4, 24
  %v26 = vld [vmem:[%s25] sm:$0xff]
  %s27 = scalar_lea.vmem %s4, 32
  %v28 = vld [vmem:[%s27] sm:$0xff]
  %v29 = vld [vmem:[%s1] sm:$0xff]
  %v30 = vld [vmem:[%s1 + $0x8] sm:$0xff]
  %v31 = vld [vmem:[%s0] sm:$0xff]
  %v32 = vld [vmem:[%s0 + $0x8] sm:$0xff]
  %v33 = vld [vmem:[%s0 + $0x10] sm:$0xff]
  %v34 = vld [vmem:[%s0 + $0x18] sm:$0xff]
  %v35 = vld [vmem:[%s0 + $0x20] sm:$0xff]
  %vm36 = vcmask 326656
  %v38 = vsel %vm36, %v29, 0
  %v41 = vsel %vm36, %v30, 0
  %43 = vmatprep.subr.mxu0 0.0
  %44 = vmatpush1.msra.mxu0 0.0
  %45 = vmatprep.subr.mxu0 0.0
  %46 = vmatpush1.msra.mxu0 0.0
  %47 = vmatprep.subr.mxu0 0.0
  %48 = vmatpush1.msra.mxu0 0.0
  %49 = vmatprep.subr.mxu0 0.0
  %50 = vmatpush1.msra.mxu0 0.0
  %51 = vmatprep.subr.mxu0 0.0
  %52 = vmatpush1.msra.mxu0 0.0
  %53 = vmatprep.subr.mxu0 0.0
  %54 = vmatpush1.msra.mxu0 0.0
  %55 = vmatprep.subr.mxu0 0.0
  %56 = vmatpush1.msra.mxu0 0.0
  %57 = vmatprep.subr.mxu0 0.0
  %58 = vmatpush1.msra.mxu0 0.0
  %59 = vmatprep.subr.mxu0 0.0
  %60 = vmatpush1.msra.mxu0 0.0
  %61 = vmatprep.subr.mxu0 0.0
  %62 = vmatpush1.msra.mxu0 0.0
  %63 = vmatprep.subr.mxu0 0.0
  %64 = vmatpush1.msra.mxu0 0.0
  %65 = vmatprep.subr.mxu0 0.0
  %66 = vmatpush1.msra.mxu0 %v35
  %67 = vmatprep.subr.mxu0 0.0
  %68 = vmatpush1.msra.mxu0 %v34
  %69 = vmatprep.subr.mxu0 0.0
  %70 = vmatpush1.msra.mxu0 %v33
  %71 = vmatprep.subr.mxu0 0.0
  %72 = vmatpush1.msra.mxu0 %v32
  %73 = vmatprep.subr.mxu0 0.0
  %74 = vmatpush1.msra.mxu0 %v31
  %75 = vmatprep.subr.mxu0 0.0
  %76 = vmatpush2.msra.mxu0 0.0
  %77 = vmatprep.subr.mxu0 0.0
  %78 = vmatpush2.msra.mxu0 0.0
  %79 = vmatprep.subr.mxu0 0.0
  %80 = vmatpush2.msra.mxu0 0.0
  %81 = vmatprep.subr.mxu0 0.0
  %82 = vmatpush2.msra.mxu0 0.0
  %83 = vmatprep.subr.mxu0 0.0
  %84 = vmatpush2.msra.mxu0 0.0
  %85 = vmatprep.subr.mxu0 0.0
  %86 = vmatpush2.msra.mxu0 0.0
  %87 = vmatprep.subr.mxu0 0.0
  %88 = vmatpush2.msra.mxu0 0.0
  %89 = vmatprep.subr.mxu0 0.0
  %90 = vmatpush2.msra.mxu0 0.0
  %91 = vmatprep.subr.mxu0 0.0
  %92 = vmatpush2.msra.mxu0 0.0
  %93 = vmatprep.subr.mxu0 0.0
  %94 = vmatpush2.msra.mxu0 0.0
  %95 = vmatprep.subr.mxu0 0.0
  %96 = vmatpush2.msra.mxu0 0.0
  %97 = vmatprep.subr.mxu0 0.0
  %98 = vmatpush2.msra.mxu0 0.0
  %99 = vmatprep.subr.mxu0 0.0
  %100 = vmatpush2.msra.mxu0 0.0
  %101 = vmatprep.subr.mxu0 0.0
  %102 = vmatpush2.msra.mxu0 0.0
  %103 = vmatprep.subr.mxu0 0.0
  %104 = vmatpush2.msra.mxu0 0.0
  %105 = vmatprep.subr.mxu0 0.0
  %106 = vmatpush2.msra.mxu0 0.0
  %107 = vmatprep.mubr.f32.mxu0 0.0
  %108 = vmatmul.mubr.f32.gmra.mxu0 %v38
  %v109 = vpop.f32.mrf.mxu0
  %v110 = vadd.f32 0.0, %v109
  %v111 = vpop.f32.mrf.mxu0
  %112 = vmatprep.mubr.f32.mxu0 0.0
  %113 = vmatmul.mubr.f32.gmra.mxu0 %v41
  %v114 = vpop.f32.mrf.mxu0
  %v115 = vadd.f32 0.0, %v114
  %v116 = vpop.f32.mrf.mxu0
  %117 = vdwg.mxu0
  %119 = vset.pattern.permute.xlu0 0
  %120 = vperm.xlu0 %119, %v28
  %v121 = vpop.permute.xlu0 %120
  %v123 = vadd.f32 %v115, %v121
  %124 = vadd.xlane.f32.xlu0 %v110
  %v125 = vpop.xlane.xlu0 %124
  %v126 = vrcp.pop 128.0
  %v127 = vmul.f32 %v125, %v126
  %v128 = vsub.f32 %v110, %v127
  %v129 = vmul.f32 %v128, %v128
  %130 = vadd.xlane.f32.xlu0 %v129
  %v131 = vpop.xlane.xlu0 %130
  %v132 = vmul.f32 %v131, %v126
  %v133 = vadd.f32 %v132, 1e-05
  %v134 = vrsqrt.pop %v133
  %v135 = vmul.f32 %v20, %v134
  %137 = vset.pattern.permute.xlu0 0
  %138 = vperm.xlu0 %137, %v135
  %v139 = vpop.permute.xlu0 %138
  %v141 = vmul.f32 %v110, %v139
  %v142 = vmul.f32 %v127, %v135
  %v143 = vsub.f32 %v22, %v142
  %145 = vset.pattern.permute.xlu0 0
  %146 = vperm.xlu0 %145, %v143
  %v147 = vpop.permute.xlu0 %146
  %v149 = vadd.f32 %v141, %v147
  %v150 = vmax.f32 %v149, 0.0
  %151 = vrot.lane.b32.xlu0 %v150, 9
  %v152 = vpop.permute.xlu0 %151
  %v153 = vld [vmem:[%s3] sm:$0x1]
  %v155 = vlaneseq
  %v156 = vshrl.u32 %v155, 7
  %v157 = vsub.s32 0, %v156
  %v158 = vrot.slane %v153, %v157
  %v160 = vmul.f32 %v152, %v158
  %161 = vrot.lane.b32.xlu0 %v150, 8
  %v162 = vpop.permute.xlu0 %161
  %s163 = scalar_lea.vmem %s3, 1
  %v164 = vld [vmem:[%s163] sm:$0x1]
  %v166 = vlaneseq
  %v167 = vshrl.u32 %v166, 7
  %v168 = vsub.s32 0, %v167
  %v169 = vrot.slane %v164, %v168
  %v171 = vmul.f32 %v162, %v169
  %172 = vrot.lane.b32.xlu0 %v150, 7
  %v173 = vpop.permute.xlu0 %172
  %s174 = scalar_lea.vmem %s3, 2
  %v175 = vld [vmem:[%s174] sm:$0x1]
  %v177 = vlaneseq
  %v178 = vshrl.u32 %v177, 7
  %v179 = vsub.s32 0, %v178
  %v180 = vrot.slane %v175, %v179
  %v182 = vmul.f32 %v173, %v180
  %183 = vrot.lane.b32.xlu0 %v150, 1
  %v184 = vpop.permute.xlu0 %183
  %s185 = scalar_lea.vmem %s3, 3
  %v186 = vld [vmem:[%s185] sm:$0x1]
  %v188 = vlaneseq
  %v189 = vshrl.u32 %v188, 7
  %v190 = vsub.s32 0, %v189
  %v191 = vrot.slane %v186, %v190
  %v193 = vmul.f32 %v184, %v191
  %194 = vrot.lane.b32.xlu0 %v150, 127
  %v195 = vpop.permute.xlu0 %194
  %s196 = scalar_lea.vmem %s3, 5
  %v197 = vld [vmem:[%s196] sm:$0x1]
  %v199 = vlaneseq
  %v200 = vshrl.u32 %v199, 7
  %v201 = vsub.s32 0, %v200
  %v202 = vrot.slane %v197, %v201
  %v204 = vmul.f32 %v195, %v202
  %205 = vrot.lane.b32.xlu0 %v150, 121
  %v206 = vpop.permute.xlu0 %205
  %s207 = scalar_lea.vmem %s3, 6
  %v208 = vld [vmem:[%s207] sm:$0x1]
  %v210 = vlaneseq
  %v211 = vshrl.u32 %v210, 7
  %v212 = vsub.s32 0, %v211
  %v213 = vrot.slane %v208, %v212
  %v215 = vmul.f32 %v206, %v213
  %216 = vrot.lane.b32.xlu0 %v150, 120
  %v217 = vpop.permute.xlu0 %216
  %s218 = scalar_lea.vmem %s3, 7
  %v219 = vld [vmem:[%s218] sm:$0x1]
  %v221 = vlaneseq
  %v222 = vshrl.u32 %v221, 7
  %v223 = vsub.s32 0, %v222
  %v224 = vrot.slane %v219, %v223
  %v226 = vmul.f32 %v217, %v224
  %227 = vrot.lane.b32.xlu0 %v150, 119
  %v228 = vpop.permute.xlu0 %227
  %s229 = scalar_lea.vmem %s3, 8
  %v230 = vld [vmem:[%s229] sm:$0x1]
  %v232 = vlaneseq
  %v233 = vshrl.u32 %v232, 7
  %v234 = vsub.s32 0, %v233
  %v235 = vrot.slane %v230, %v234
  %v237 = vmul.f32 %v228, %v235
  %v238 = vld [vmem:[%s2] sm:$0xff]
  %vm239 = vcmask 588800
  %v241 = vsel %vm239, %v238, 0
  %243 = vmatprep.subr.mxu0 0.0
  %244 = vmatpush1.msra.mxu0 0.0
  %245 = vmatprep.subr.mxu0 0.0
  %246 = vmatpush1.msra.mxu0 0.0
  %247 = vmatprep.subr.mxu0 0.0
  %248 = vmatpush1.msra.mxu0 0.0
  %249 = vmatprep.subr.mxu0 0.0
  %250 = vmatpush1.msra.mxu0 0.0
  %251 = vmatprep.subr.mxu0 0.0
  %252 = vmatpush1.msra.mxu0 0.0
  %253 = vmatprep.subr.mxu0 0.0
  %254 = vmatpush1.msra.mxu0 0.0
  %255 = vmatprep.subr.mxu0 0.0
  %256 = vmatpush1.msra.mxu0 0.0
  %257 = vmatprep.subr.mxu0 0.0
  %258 = vmatpush1.msra.mxu0 %v237
  %259 = vmatprep.subr.mxu0 0.0
  %260 = vmatpush1.msra.mxu0 %v226
  %261 = vmatprep.subr.mxu0 0.0
  %262 = vmatpush1.msra.mxu0 %v215
  %263 = vmatprep.subr.mxu0 0.0
  %264 = vmatpush1.msra.mxu0 %v204
  %265 = vmatprep.subr.mxu0 0.0
  %266 = vmatpush1.msra.mxu0 %v150
  %267 = vmatprep.subr.mxu0 0.0
  %268 = vmatpush1.msra.mxu0 %v193
  %269 = vmatprep.subr.mxu0 0.0
  %270 = vmatpush1.msra.mxu0 %v182
  %271 = vmatprep.subr.mxu0 0.0
  %272 = vmatpush1.msra.mxu0 %v171
  %273 = vmatprep.subr.mxu0 0.0
  %274 = vmatpush1.msra.mxu0 %v160
  %275 = vmatprep.subr.mxu0 0.0
  %276 = vmatpush2.msra.mxu0 0.0
  %277 = vmatprep.subr.mxu0 0.0
  %278 = vmatpush2.msra.mxu0 0.0
  %279 = vmatprep.subr.mxu0 0.0
  %280 = vmatpush2.msra.mxu0 0.0
  %281 = vmatprep.subr.mxu0 0.0
  %282 = vmatpush2.msra.mxu0 0.0
  %283 = vmatprep.subr.mxu0 0.0
  %284 = vmatpush2.msra.mxu0 0.0
  %285 = vmatprep.subr.mxu0 0.0
  %286 = vmatpush2.msra.mxu0 0.0
  %287 = vmatprep.subr.mxu0 0.0
  %288 = vmatpush2.msra.mxu0 0.0
  %289 = vmatprep.subr.mxu0 0.0
  %290 = vmatpush2.msra.mxu0 0.0
  %291 = vmatprep.subr.mxu0 0.0
  %292 = vmatpush2.msra.mxu0 0.0
  %293 = vmatprep.subr.mxu0 0.0
  %294 = vmatpush2.msra.mxu0 0.0
  %295 = vmatprep.subr.mxu0 0.0
  %296 = vmatpush2.msra.mxu0 0.0
  %297 = vmatprep.subr.mxu0 0.0
  %298 = vmatpush2.msra.mxu0 0.0
  %299 = vmatprep.subr.mxu0 0.0
  %300 = vmatpush2.msra.mxu0 0.0
  %301 = vmatprep.subr.mxu0 0.0
  %302 = vmatpush2.msra.mxu0 0.0
  %303 = vmatprep.subr.mxu0 0.0
  %304 = vmatpush2.msra.mxu0 0.0
  %305 = vmatprep.subr.mxu0 0.0
  %306 = vmatpush2.msra.mxu0 0.0
  %307 = vmatprep.mubr.f32.mxu0 0.0
  %308 = vmatmul.mubr.f32.gmra.mxu0 %v241
  %v309 = vpop.f32.mrf.mxu0
  %v310 = vadd.f32 0.0, %v309
  %v311 = vpop.f32.mrf.mxu0
  %312 = vdwg.mxu0
  %313 = vadd.xlane.f32.xlu0 %v310
  %v314 = vpop.xlane.xlu0 %313
  %v315 = vmul.f32 %v314, %v126
  %v316 = vsub.f32 %v310, %v315
  %v317 = vmul.f32 %v316, %v316
  %318 = vadd.xlane.f32.xlu0 %v317
  %v319 = vpop.xlane.xlu0 %318
  %v320 = vmul.f32 %v319, %v126
  %v321 = vadd.f32 %v320, 1e-05
  %v322 = vrsqrt.pop %v321
  %v323 = vmul.f32 %v24, %v322
  %325 = vset.pattern.permute.xlu0 0
  %326 = vperm.xlu0 %325, %v323
  %v327 = vpop.permute.xlu0 %326
  %v329 = vmul.f32 %v310, %v327
  %v330 = vmul.f32 %v315, %v323
  %v331 = vsub.f32 %v26, %v330
  %333 = vset.pattern.permute.xlu0 0
  %334 = vperm.xlu0 %333, %v331
  %v335 = vpop.permute.xlu0 %334
  %v337 = vadd.f32 %v329, %v335
  %v338 = vadd.f32 %v337, %v123
  %v339 = vmax.f32 %v338, 0.0
  %340 = vst [vmem:[%s5] sm:$0xff] %v339
  // Predicated region
  $region22: #{resnet_layer_forward.1} parent=0 // pred_check
    _
  $region23: #{resnet_layer_forward.1} parent=0 // pred_check_branch
    %342 = sbr.rel (0) target = $region25
  $region24: #{resnet_layer_forward.1} parent=0 // pred_region
    _
  $region25: #{resnet_layer_forward.1} parent=0 // pred_fallthru
    _
  // Predicated region
  $region26: #{resnet_layer_forward.1} parent=0 // pred_check
    _
  $region27: #{resnet_layer_forward.1} parent=0 // pred_check_branch
    %344 = sbr.rel (0) target = $region29
  $region28: #{resnet_layer_forward.1} parent=0 // pred_region
    _
  $region29: #{resnet_layer_forward.1} parent=0 // pred_fallthru
    _

</llo_original>
